<compile_context>
chip_gen: v7x
topology: tpu7x:2x2x1
jax: 0.10.0
libtpu: 0.0.40
codegen_flags: <defaults>
</compile_context>

<pallas_src>
import jax
import jax.numpy as jnp
from jax.experimental import pallas as pl
from jax.experimental.pallas import tpu as pltpu


def _round_up(x, m):
    return ((x + m - 1) // m) * m


def region_clf_kernel(x_ref, lens_ref, w_ref, b_ref, out_ref):
    # x_ref:    VMEM (Bt, L, D) f32   -- Bt regions, zero-padded along L
    # lens_ref: VMEM (Bt, 1)   i32    -- valid length per region
    # w_ref:    VMEM (3*D, C_pad) f32 -- transposed Linear weight, lane-padded
    # b_ref:    VMEM (1, C_pad) f32
    # out_ref:  VMEM (Bt, C_pad) f32
    x = x_ref[...]
    bt, l, d = x.shape

    n = lens_ref[...]                                          # (Bt, 1) int32
    n3 = n.reshape(bt, 1, 1)
    row = jax.lax.broadcasted_iota(jnp.int32, (bt, l, 1), 1)   # (Bt, L, 1)

    # hidden[0]
    first = x[:, 0, :]                                         # (Bt, D)

    # Padding rows are exactly zero (wrapper contract), therefore:
    #   * the mean needs NO validity mask -- a plain sum over L already
    #     excludes padding (saves one (Bt,L,D) vsel on the streaming path);
    #   * the last valid row is the row == n-1 masked sum.
    # Both reductions consume the same x tile -> a single streaming pass.
    total = jnp.sum(x, axis=1)                                  # (Bt, D)
    last = jnp.sum(jnp.where(row == n3 - 1, x, 0.0), axis=1)    # (Bt, D)

    # Exact reciprocal on a (Bt, 1) vector -- essentially free, keeps strict
    # parity with torch.mean.
    inv_n = 1.0 / jnp.maximum(n, 1).astype(jnp.float32)
    mean = total * inv_n                                        # (Bt, D)

    # ReLU is elementwise -> apply per piece and split the (3D, C) matmul into
    # three D-wide dots on static weight slices (zero-cost ref views), all
    # accumulating in f32.
    acc = jnp.dot(jnp.maximum(first, 0.0), w_ref[0:d, :],
                  preferred_element_type=jnp.float32)
    acc += jnp.dot(jnp.maximum(mean, 0.0), w_ref[d:2 * d, :],
                   preferred_element_type=jnp.float32)
    acc += jnp.dot(jnp.maximum(last, 0.0), w_ref[2 * d:3 * d, :],
                   preferred_element_type=jnp.float32)
    out_ref[...] = (acc + b_ref[...]).astype(out_ref.dtype)


def _choose_bt(B, L, D, itemsize=4):
    """Pick (Bt, B_pad): regions per grid step and the (lightly) padded batch."""
    B8 = _round_up(B, 8)
    bytes_per_region = L * D * itemsize

    try:
        vmem_cap = pltpu.get_tpu_info().vmem_capacity_bytes
    except Exception:  # pragma: no cover - conservative fallback
        vmem_cap = 64 * 1024 * 1024  # assume the smallest (v7x) VMEM

    # Budget for ONE x buffer; the pipeline double-buffers it, and we must also
    # leave room for W/b, the double-buffered output tile, lens and headroom.
    x_buf_budget = min(16 * 1024 * 1024, max(2 * 1024 * 1024, vmem_cap // 6))
    bt_cap = max(8, (x_buf_budget // bytes_per_region) // 8 * 8)

    if B8 <= bt_cap:
        # Whole batch fits in one tile.  Give v7x's second TensorCore work by
        # splitting into 2 steps when each half-tile is still >= ~1 MiB (so the
        # ~0.35 us/step overhead stays amortized); neutral on v5e/v6e.
        if B8 % 16 == 0 and (B8 // 2) * bytes_per_region >= (1 << 20):
            return B8 // 2, B8
        return B8, B8

    # Multi-step: prefer a Bt that divides B8 exactly, so the wrapper never has
    # to jnp.pad the full x tensor (a full extra HBM read+write of the input).
    bt = (min(bt_cap, B8) // 8) * 8
    best = None
    while bt >= 8:
        if B8 % bt == 0:
            best = bt
            break
        bt -= 8
    if best is not None and best * 2 >= bt_cap:
        return best, B8
    # Rare fallback: no good divisor -> take the largest tile and pad the batch.
    return bt_cap, _round_up(B, bt_cap)


def region_clf(x_padded, lens, w_t, bias):
    """x_padded: (B, L_max, D) f32 (zero past lens); lens: (B,) i32;
    w_t: (3*D, C); bias: (1, C)."""
    B, L, D = x_padded.shape
    C = w_t.shape[-1]

    # Lane-dense output: pad the class dim up to a multiple of 128.
    C_pad = _round_up(C, 128)

    Bt, B_pad = _choose_bt(B, L, D)

    if B_pad != B:
        # Tail pad only (<= 7 regions on the common path); padded regions get
        # lens=1 so the 1/n guard never divides by zero.  Their outputs are
        # sliced off below.
        x_padded = jnp.pad(x_padded, ((0, B_pad - B), (0, 0), (0, 0)))
        lens = jnp.pad(lens, (0, B_pad - B), constant_values=1)
    lens2d = lens.astype(jnp.int32).reshape(B_pad, 1)
    w_p = jnp.pad(w_t.astype(jnp.float32), ((0, 0), (0, C_pad - C)))
    b_p = jnp.pad(jnp.reshape(bias, (1, C)).astype(jnp.float32),
                  ((0, 0), (0, C_pad - C)))

    # VMEM plan: double-buffered x and out tiles + resident W/b + lens tiles.
    x_tile = Bt * L * D * 4
    out_tile = Bt * C_pad * 4
    lens_tile = Bt * 128 * 4           # (Bt, 1) i32 pads to 128 lanes in VMEM
    w_bytes = 3 * D * C_pad * 4 + C_pad * 4
    vmem_plan = 2 * x_tile + 2 * out_tile + 2 * lens_tile + w_bytes
    vmem_limit = int(min(max(vmem_plan + (4 << 20), 16 << 20), 60 << 20))

    out = pl.pallas_call(
        region_clf_kernel,
        out_shape=jax.ShapeDtypeStruct((B_pad, C_pad), jnp.float32),
        grid_spec=pltpu.PrefetchScalarGridSpec(
            num_scalar_prefetch=0,
            grid=(B_pad // Bt,),
            in_specs=[
                pl.BlockSpec((Bt, L, D), lambda i: (i, 0, 0)),
                pl.BlockSpec((Bt, 1), lambda i: (i, 0)),
                pl.BlockSpec((3 * D, C_pad), lambda i: (0, 0)),
                pl.BlockSpec((1, C_pad), lambda i: (0, 0)),
            ],
            out_specs=pl.BlockSpec((Bt, C_pad), lambda i: (i, 0)),
        ),
        compiler_params=pltpu.CompilerParams(
            # Independent regions; shards grid steps across v7x's two TCs.
            dimension_semantics=("parallel",),
            vmem_limit_bytes=vmem_limit,
        ),
    )(x_padded, lens2d, w_p, b_p)
    return out[:B, :C]


def ref_forward(data_list, w_t, bias):
    # Pure-JAX reference mirroring the PyTorch module semantics.
    reps = []
    for h in data_list:
        rep = jnp.concatenate([h[0], jnp.mean(h, axis=0), h[-1]], axis=-1)
        reps.append(rep[None, :])
    r = jnp.concatenate(reps, axis=0)               # (B, 3*D)
    return jnp.maximum(r, 0.0) @ w_t + bias         # ReLU then Linear


if __name__ == "__main__":
    key = jax.random.PRNGKey(0)
    D = 128            # input_dim
    C = 8              # n_classes
    lengths = [5, 8, 3, 6]
    B = len(lengths)
    L_max = max(lengths)

    # Build the "data_list" of variable-length regions deterministically.
    keys = jax.random.split(key, B + 2)
    data_list = [
        jax.random.normal(keys[i], (lengths[i], D), dtype=jnp.float32)
        for i in range(B)
    ]

    # Deterministic parameter init (Linear(3*D, C)): stored transposed (3*D, C).
    w_t = jax.random.normal(keys[B], (3 * D, C), dtype=jnp.float32) * 0.02
    bias = jax.random.normal(keys[B + 1], (1, C), dtype=jnp.float32) * 0.01

    # Pad regions into (B, L_max, D) (zero past each length) + lengths vector.
    x_padded = jnp.zeros((B, L_max, D), dtype=jnp.float32)
    for i, h in enumerate(data_list):
        x_padded = x_padded.at[i, : lengths[i], :].set(h)
    lens = jnp.asarray(lengths, dtype=jnp.int32)

    out = region_clf(x_padded, lens, w_t, bias)
    out = jax.block_until_ready(out)

    ref = ref_forward(data_list, w_t, bias)
    assert out.shape == (B, C)
    assert jnp.allclose(out, ref, atol=1e-3, rtol=1e-3), (out, ref)
    print("KERNEL_OK")
</pallas_src>

<mosaic_0001>
module attributes {stable_mosaic.version = 11 : i64} {
  func.func @region_clf_kernel(%arg0: i32, %arg1: memref<8x8x128xf32, #tpu.memory_space<vmem>>, %arg2: memref<8x1xi32, #tpu.memory_space<vmem>>, %arg3: memref<384x128xf32, #tpu.memory_space<vmem>>, %arg4: memref<1x128xf32, #tpu.memory_space<vmem>>, %arg5: memref<8x128xf32, #tpu.memory_space<vmem>>) attributes {dimension_semantics = [#tpu.dimension_semantics<parallel>], iteration_bounds = array<i64: 1>, scalar_prefetch = 0 : i64, scratch_operands = 0 : i64, tpu.core_type = #tpu.core_type<tc>, window_params = [{transform_indices = @transform_0, window_bounds = array<i64: 8, 8, 128>}, {transform_indices = @transform_1, window_bounds = array<i64: 8, 1>}, {pipeline_mode = #tpu.pipeline_mode<synchronous>, transform_indices = @transform_2, window_bounds = array<i64: 384, 128>}, {pipeline_mode = #tpu.pipeline_mode<synchronous>, transform_indices = @transform_3, window_bounds = array<i64: 1, 128>}, {transform_indices = @transform_4, window_bounds = array<i64: 8, 128>}]} {
    %c0 = arith.constant 0 : index
    %c0_0 = arith.constant 0 : index
    %c0_1 = arith.constant 0 : index
    %0 = vector.load %arg1[%c0, %c0_0, %c0_1] : memref<8x8x128xf32, #tpu.memory_space<vmem>>, vector<8x8x128xf32>
    %c0_2 = arith.constant 0 : index
    %c0_3 = arith.constant 0 : index
    %1 = vector.load %arg2[%c0_2, %c0_3] : memref<8x1xi32, #tpu.memory_space<vmem>>, vector<8x1xi32>
    %2 = vector.shape_cast %1 : vector<8x1xi32> to vector<8x1x1xi32>
    %3 = tpu.iota {dimensions = array<i32: 1>} : vector<8x8x1xi32>
    %4 = vector.extract_strided_slice %0 {offsets = [0, 0, 0], sizes = [8, 1, 128], strides = [1, 1, 1]} : vector<8x8x128xf32> to vector<8x1x128xf32>
    %5 = vector.shape_cast %4 : vector<8x1x128xf32> to vector<8x128xf32>
    %cst = arith.constant dense<0.000000e+00> : vector<8x128xf32>
    %6 = vector.multi_reduction <add>, %0, %cst [1] : vector<8x8x128xf32> to vector<8x128xf32>
    %c1_i32 = arith.constant 1 : i32
    %7 = vector.broadcast %c1_i32 : i32 to vector<8x1x1xi32>
    %8 = arith.subi %2, %7 : vector<8x1x1xi32>
    %9 = vector.broadcast %8 : vector<8x1x1xi32> to vector<8x8x1xi32>
    %10 = arith.cmpi eq, %3, %9 : vector<8x8x1xi32>
    %cst_4 = arith.constant 0.000000e+00 : f32
    %11 = vector.shape_cast %10 : vector<8x8x1xi1> to vector<8x8x1xi1>
    %12 = vector.broadcast %11 : vector<8x8x1xi1> to vector<8x8x128xi1>
    %13 = vector.broadcast %cst_4 : f32 to vector<8x8x128xf32>
    %14 = arith.select %12, %0, %13 : vector<8x8x128xi1>, vector<8x8x128xf32>
    %cst_5 = arith.constant dense<0.000000e+00> : vector<8x128xf32>
    %15 = vector.multi_reduction <add>, %14, %cst_5 [1] : vector<8x8x128xf32> to vector<8x128xf32>
    %c1_i32_6 = arith.constant 1 : i32
    %16 = vector.broadcast %c1_i32_6 : i32 to vector<8x1xi32>
    %17 = arith.maxsi %1, %16 : vector<8x1xi32>
    %18 = arith.sitofp %17 : vector<8x1xi32> to vector<8x1xf32>
    %cst_7 = arith.constant 1.000000e+00 : f32
    %19 = vector.broadcast %cst_7 : f32 to vector<8x1xf32>
    %20 = arith.divf %19, %18 : vector<8x1xf32>
    %21 = vector.broadcast %20 : vector<8x1xf32> to vector<8x128xf32>
    %22 = arith.mulf %6, %21 : vector<8x128xf32>
    %cst_8 = arith.constant 0.000000e+00 : f32
    %23 = vector.broadcast %cst_8 : f32 to vector<8x128xf32>
    %24 = arith.maximumf %5, %23 : vector<8x128xf32>
    %c0_9 = arith.constant 0 : index
    %c0_10 = arith.constant 0 : index
    %25 = vector.load %arg3[%c0_9, %c0_10] : memref<384x128xf32, #tpu.memory_space<vmem>>, vector<128x128xf32>
    %cst_11 = arith.constant dense<0.000000e+00> : vector<8x128xf32>
    %26 = tpu.matmul %24, %25, %cst_11 {dimension_numbers = #tpu.dot_dimension_numbers<[1], [0], [0], [1], [0, 0, 1, 1], [], []>} : vector<8x128xf32>, vector<128x128xf32>, vector<8x128xf32> -> vector<8x128xf32>
    %cst_12 = arith.constant 0.000000e+00 : f32
    %27 = vector.broadcast %cst_12 : f32 to vector<8x128xf32>
    %28 = arith.maximumf %22, %27 : vector<8x128xf32>
    %c128 = arith.constant 128 : index
    %c0_13 = arith.constant 0 : index
    %29 = vector.load %arg3[%c128, %c0_13] : memref<384x128xf32, #tpu.memory_space<vmem>>, vector<128x128xf32>
    %cst_14 = arith.constant dense<0.000000e+00> : vector<8x128xf32>
    %30 = tpu.matmul %28, %29, %cst_14 {dimension_numbers = #tpu.dot_dimension_numbers<[1], [0], [0], [1], [0, 0, 1, 1], [], []>} : vector<8x128xf32>, vector<128x128xf32>, vector<8x128xf32> -> vector<8x128xf32>
    %31 = arith.addf %26, %30 : vector<8x128xf32>
    %cst_15 = arith.constant 0.000000e+00 : f32
    %32 = vector.broadcast %cst_15 : f32 to vector<8x128xf32>
    %33 = arith.maximumf %15, %32 : vector<8x128xf32>
    %c256 = arith.constant 256 : index
    %c0_16 = arith.constant 0 : index
    %34 = vector.load %arg3[%c256, %c0_16] : memref<384x128xf32, #tpu.memory_space<vmem>>, vector<128x128xf32>
    %cst_17 = arith.constant dense<0.000000e+00> : vector<8x128xf32>
    %35 = tpu.matmul %33, %34, %cst_17 {dimension_numbers = #tpu.dot_dimension_numbers<[1], [0], [0], [1], [0, 0, 1, 1], [], []>} : vector<8x128xf32>, vector<128x128xf32>, vector<8x128xf32> -> vector<8x128xf32>
    %36 = arith.addf %31, %35 : vector<8x128xf32>
    %c0_18 = arith.constant 0 : index
    %c0_19 = arith.constant 0 : index
    %37 = vector.load %arg4[%c0_18, %c0_19] : memref<1x128xf32, #tpu.memory_space<vmem>>, vector<1x128xf32>
    %38 = vector.broadcast %37 : vector<1x128xf32> to vector<8x128xf32>
    %39 = arith.addf %36, %38 : vector<8x128xf32>
    %c0_20 = arith.constant 0 : index
    %c0_21 = arith.constant 0 : index
    %40 = vector.load %arg5[%c0_20, %c0_21] : memref<8x128xf32, #tpu.memory_space<vmem>>, vector<8x128xf32>
    tpu.vector_store %arg5[%c0_20, %c0_21], %39 {strides = array<i32>} : memref<8x128xf32, #tpu.memory_space<vmem>>, vector<8x128xf32>,
    return
  }
  func.func @transform_0(%arg0: i32) -> (i32, i32, i32) {
    %c0_i32 = arith.constant 0 : i32
    %c0_i32_0 = arith.constant 0 : i32
    %c0_i32_1 = arith.constant 0 : i32
    return %arg0, %c0_i32, %c0_i32_0 : i32, i32, i32
  }
  func.func @transform_1(%arg0: i32) -> (i32, i32) {
    %c0_i32 = arith.constant 0 : i32
    %c0_i32_0 = arith.constant 0 : i32
    return %arg0, %c0_i32 : i32, i32
  }
  func.func @transform_2(%arg0: i32) -> (i32, i32) {
    %c0_i32 = arith.constant 0 : i32
    %c0_i32_0 = arith.constant 0 : i32
    %c0_i32_1 = arith.constant 0 : i32
    return %c0_i32, %c0_i32_0 : i32, i32
  }
  func.func @transform_3(%arg0: i32) -> (i32, i32) {
    %c0_i32 = arith.constant 0 : i32
    %c0_i32_0 = arith.constant 0 : i32
    %c0_i32_1 = arith.constant 0 : i32
    return %c0_i32, %c0_i32_0 : i32, i32
  }
  func.func @transform_4(%arg0: i32) -> (i32, i32) {
    %c0_i32 = arith.constant 0 : i32
    %c0_i32_0 = arith.constant 0 : i32
    return %arg0, %c0_i32 : i32, i32
  }
}

</mosaic_0001>

<llo_original>
// kernel: tpu_custom_call.1
$region0: #{tpu_custom_call.1}
  #allocation0 [shape = 'u32[]', space=smem, size = 0x4, offset = 0x4, fixed_abs, tag = 'smem constant byte address 0x4 - core index']
  #allocation1 [shape = 'u32[144,128]{1,0:T(1,128)}', space=vmem, size = 0x12000, scoped, tag = 'internal scratch']
  %s0 = inlined_call_operand.hbm [shape: f32[8,8,128], index: 0, kind: input, shape index: {}]
  %s1 = inlined_call_operand.vmem [shape: s32[8,1], index: 1, kind: input, shape index: {}]
  %s2 = inlined_call_operand.hbm [shape: f32[384,128], index: 2, kind: input, shape index: {}]
  %s3 = inlined_call_operand.vmem [shape: f32[1,128], index: 3, kind: input, shape index: {}]
  %s4 = inlined_call_operand.hbm [shape: f32[8,128], index: 4, kind: output, shape index: {}]
  %s5 = sld [smem:[#allocation0]]
  $region34: #{tpu_custom_call.1} parent=0
    _
  %s7 = ssub.s32 1, %s5
  %s8 = scalar_select 0, %s7, %s5
  $region1: #{tpu_custom_call.1} parent=0
    #allocation2 [shape = 'u8[32768]{0}', space=vmem, size = 0x8000, scoped, tag = 'input window, operand 0, single buffered']
    #allocation3 [shape = 's32[1]{0}', space=sflag, size = 0x4, scoped, tag = 'scoped memory for tpu_custom_call.1']
    #allocation4 [shape = 's32[1]{0}', space=sflag, size = 0x4, scoped, tag = 'scoped memory for tpu_custom_call.1']
    #allocation5 [shape = 'u8[196608]{0}', space=vmem, size = 0x30000, scoped, tag = 'input window, operand 2, single buffered']
    #allocation6 [shape = 's32[1]{0}', space=sflag, size = 0x4, scoped, tag = 'scoped memory for tpu_custom_call.1']
    #allocation7 [shape = 'u8[4096]{0}', space=vmem, size = 0x1000, scoped, tag = 'output window, operand 0, single buffered']
    %9 = vsyncpa [#allocation3], 0
    %10 = vsyncpa [#allocation6], 0
    %11 = vsyncpa [#allocation4], 0
    // Predicated region
    $region2: #{tpu_custom_call.1} parent=1 // pred_check
      _
    $region3: #{tpu_custom_call.1} parent=1 // pred_check_branch
      %13 = sbr.rel (0) target = $region5
    $region4: #{tpu_custom_call.1} parent=1 // pred_region
      %s15 = ssub.s32 1024, 1024
      %16 = vsyncadd [#allocation3], %s15
      %s17 = sshll.u32 [#allocation2], 4
      %s18 = int_to_ptr.vmem [resolvable:$true] %s17
      %23 = dma.hbm_to_vmem [thread:$0]  %s0, 1024, %s18, [#allocation3], 128, 128, 8
    $region5: #{tpu_custom_call.1} parent=1 // pred_fallthru
      _
    // Predicated region
    $region6: #{tpu_custom_call.1} parent=1 // pred_check
      _
    $region7: #{tpu_custom_call.1} parent=1 // pred_check_branch
      %25 = sbr.rel (0) target = $region9
    $region8: #{tpu_custom_call.1} parent=1 // pred_region
      _
    $region9: #{tpu_custom_call.1} parent=1 // pred_fallthru
      _
    // Predicated region
    $region10: #{tpu_custom_call.1} parent=1 // pred_check
      _
    $region11: #{tpu_custom_call.1} parent=1 // pred_check_branch
      %27 = sbr.rel (0) target = $region13
    $region12: #{tpu_custom_call.1} parent=1 // pred_region
      %s29 = ssub.s32 6144, 6144
      %30 = vsyncadd [#allocation6], %s29
      %s31 = sshll.u32 [#allocation5], 4
      %s32 = int_to_ptr.vmem [resolvable:$true] %s31
      %37 = dma.hbm_to_vmem [thread:$0]  %s2, 6144, %s32, [#allocation6], 128, 128, 8
    $region13: #{tpu_custom_call.1} parent=1 // pred_fallthru
      _
    // Predicated region
    $region14: #{tpu_custom_call.1} parent=1 // pred_check
      _
    $region15: #{tpu_custom_call.1} parent=1 // pred_check_branch
      %39 = sbr.rel (0) target = $region17
    $region16: #{tpu_custom_call.1} parent=1 // pred_region
      _
    $region17: #{tpu_custom_call.1} parent=1 // pred_fallthru
      _
    // Predicated region
    $region18: #{tpu_custom_call.1} parent=1 // pred_check
      _
    $region19: #{tpu_custom_call.1} parent=1 // pred_check_branch
      %41 = sbr.rel (0) target = $region21
    $region20: #{tpu_custom_call.1} parent=1 // pred_region
      %42 = dma.done [#allocation3], 1024
    $region21: #{tpu_custom_call.1} parent=1 // pred_fallthru
      _
    // Predicated region
    $region22: #{tpu_custom_call.1} parent=1 // pred_check
      _
    $region23: #{tpu_custom_call.1} parent=1 // pred_check_branch
      %44 = sbr.rel (0) target = $region25
    $region24: #{tpu_custom_call.1} parent=1 // pred_region
      %45 = dma.done [#allocation6], 6144
    $region25: #{tpu_custom_call.1} parent=1 // pred_fallthru
      _
    %v46 = vld [vmem:[#allocation2] sm:$0xff]
    %v47 = vld [vmem:[#allocation2 + $0x8] sm:$0xff]
    %v48 = vld [vmem:[#allocation2 + $0x10] sm:$0xff]
    %v49 = vld [vmem:[#allocation2 + $0x18] sm:$0xff]
    %v50 = vld [vmem:[#allocation2 + $0x20] sm:$0xff]
    %v51 = vld [vmem:[#allocation2 + $0x28] sm:$0xff]
    %v52 = vld [vmem:[#allocation2 + $0x30] sm:$0xff]
    %v53 = vld [vmem:[#allocation2 + $0x38] sm:$0xff]
    %v54 = vld [vmem:[%s1] sm:$0xff]
    %v55 = vcombine.high %v54, %v54
    %v57 = vunpack.c.l.s4 1966171168
    %v58 = vunpack.c.0.s8 %v57
    %v59 = vlaneseq
    %v60 = vshrl.u32 %v59, 7
    %v61 = vsub.s32 %v58, %v60
    %v62 = vrot.slane %v54, %v61
    %v64 = vunpack.c.l.s4 1966171168
    %v65 = vunpack.c.0.s8 %v64
    %v66 = vlaneseq
    %v67 = vshrl.u32 %v66, 7
    %v68 = vsub.s32 %v65, %v67
    %v69 = vrot.slane %v55, %v68
    %v70 = vcombine.high %v62, %v62
    %v71 = vcombine.high %v69, %v69
    %v73 = vunpack.c.l.s4 1966171168
    %v74 = vunpack.c.0.s8 %v73
    %v75 = vlaneseq
    %v76 = vshrl.u32 %v75, 7
    %v77 = vsub.s32 %v74, %v76
    %v78 = vrot.slane %v62, %v77
    %v80 = vunpack.c.l.s4 1966171168
    %v81 = vunpack.c.0.s8 %v80
    %v82 = vlaneseq
    %v83 = vshrl.u32 %v82, 7
    %v84 = vsub.s32 %v81, %v83
    %v85 = vrot.slane %v69, %v84
    %v87 = vunpack.c.l.s4 1966171168
    %v88 = vunpack.c.0.s8 %v87
    %v89 = vlaneseq
    %v90 = vshrl.u32 %v89, 7
    %v91 = vsub.s32 %v88, %v90
    %v92 = vrot.slane %v70, %v91
    %v94 = vunpack.c.l.s4 1966171168
    %v95 = vunpack.c.0.s8 %v94
    %v96 = vlaneseq
    %v97 = vshrl.u32 %v96, 7
    %v98 = vsub.s32 %v95, %v97
    %v99 = vrot.slane %v71, %v98
    %v100 = vcombine.high %v78, %v78
    %v101 = vcombine.high %v85, %v85
    %v102 = vcombine.high %v92, %v92
    %v103 = vcombine.high %v99, %v99
    %v104 = vlaneseq
    %v105 = vshrl.u32 %v104, 7
    %v106 = vrot.slane %v46, 4
    %v107 = vadd.f32 %v46, %v106
    %v108 = vrot.slane %v107, 2
    %v109 = vadd.f32 %v107, %v108
    %v110 = vrot.slane %v109, 1
    %v111 = vadd.f32 %v109, %v110
    %v112 = vrot.slane %v47, 4
    %v113 = vadd.f32 %v47, %v112
    %v114 = vrot.slane %v113, 2
    %v115 = vadd.f32 %v113, %v114
    %v116 = vrot.slane %v115, 1
    %v117 = vadd.f32 %v115, %v116
    %v118 = vrot.slane %v48, 4
    %v119 = vadd.f32 %v48, %v118
    %v120 = vrot.slane %v119, 2
    %v121 = vadd.f32 %v119, %v120
    %v122 = vrot.slane %v121, 1
    %v123 = vadd.f32 %v121, %v122
    %v124 = vrot.slane %v49, 4
    %v125 = vadd.f32 %v49, %v124
    %v126 = vrot.slane %v125, 2
    %v127 = vadd.f32 %v125, %v126
    %v128 = vrot.slane %v127, 1
    %v129 = vadd.f32 %v127, %v128
    %v130 = vrot.slane %v50, 4
    %v131 = vadd.f32 %v50, %v130
    %v132 = vrot.slane %v131, 2
    %v133 = vadd.f32 %v131, %v132
    %v134 = vrot.slane %v133, 1
    %v135 = vadd.f32 %v133, %v134
    %v136 = vrot.slane %v51, 4
    %v137 = vadd.f32 %v51, %v136
    %v138 = vrot.slane %v137, 2
    %v139 = vadd.f32 %v137, %v138
    %v140 = vrot.slane %v139, 1
    %v141 = vadd.f32 %v139, %v140
    %v142 = vrot.slane %v52, 4
    %v143 = vadd.f32 %v52, %v142
    %v144 = vrot.slane %v143, 2
    %v145 = vadd.f32 %v143, %v144
    %v146 = vrot.slane %v145, 1
    %v147 = vadd.f32 %v145, %v146
    %v148 = vrot.slane %v53, 4
    %v149 = vadd.f32 %v53, %v148
    %v150 = vrot.slane %v149, 2
    %v151 = vadd.f32 %v149, %v150
    %v152 = vrot.slane %v151, 1
    %v153 = vadd.f32 %v151, %v152
    %v154 = vsub.s32 %v78, 1
    %v155 = vsub.s32 %v92, 1
    %v156 = vsub.s32 %v100, 1
    %v157 = vsub.s32 %v102, 1
    %v158 = vsub.s32 %v85, 1
    %v159 = vsub.s32 %v99, 1
    %v160 = vsub.s32 %v101, 1
    %v161 = vsub.s32 %v103, 1
    %v162 = vlaneseq
    %v163 = vshrl.u32 %v162, 7
    %v164 = vsub.s32 0, %v163
    %v165 = vrot.slane %v154, %v164
    %v166 = vlaneseq
    %v167 = vshrl.u32 %v166, 7
    %v168 = vsub.s32 0, %v167
    %v169 = vrot.slane %v155, %v168
    %v170 = vlaneseq
    %v171 = vshrl.u32 %v170, 7
    %v172 = vsub.s32 0, %v171
    %v173 = vrot.slane %v156, %v172
    %v174 = vlaneseq
    %v175 = vshrl.u32 %v174, 7
    %v176 = vsub.s32 0, %v175
    %v177 = vrot.slane %v157, %v176
    %v178 = vlaneseq
    %v179 = vshrl.u32 %v178, 7
    %v180 = vsub.s32 0, %v179
    %v181 = vrot.slane %v158, %v180
    %v182 = vlaneseq
    %v183 = vshrl.u32 %v182, 7
    %v184 = vsub.s32 0, %v183
    %v185 = vrot.slane %v159, %v184
    %v186 = vlaneseq
    %v187 = vshrl.u32 %v186, 7
    %v188 = vsub.s32 0, %v187
    %v189 = vrot.slane %v160, %v188
    %v190 = vlaneseq
    %v191 = vshrl.u32 %v190, 7
    %v192 = vsub.s32 0, %v191
    %v193 = vrot.slane %v161, %v192
    %vm194 = vcmp.eq.s32.totalorder %v105, %v165
    %vm195 = vcmp.eq.s32.totalorder %v105, %v169
    %vm196 = vcmp.eq.s32.totalorder %v105, %v173
    %vm197 = vcmp.eq.s32.totalorder %v105, %v177
    %vm198 = vcmp.eq.s32.totalorder %v105, %v181
    %vm199 = vcmp.eq.s32.totalorder %v105, %v185
    %vm200 = vcmp.eq.s32.totalorder %v105, %v189
    %vm201 = vcmp.eq.s32.totalorder %v105, %v193
    %v202 = vsel %vm194, 1, 0
    %v203 = vsel %vm195, 1, 0
    %v204 = vsel %vm196, 1, 0
    %v205 = vsel %vm197, 1, 0
    %v206 = vsel %vm198, 1, 0
    %v207 = vsel %vm199, 1, 0
    %v208 = vsel %vm200, 1, 0
    %v209 = vsel %vm201, 1, 0
    %210 = vset.pattern.permute.xlu0 0
    %211 = vperm.xlu0 %210, %v202
    %v212 = vpop.permute.xlu0 %211
    %213 = vset.pattern.permute.xlu0 0
    %214 = vperm.xlu0 %213, %v203
    %v215 = vpop.permute.xlu0 %214
    %216 = vset.pattern.permute.xlu0 0
    %217 = vperm.xlu0 %216, %v204
    %v218 = vpop.permute.xlu0 %217
    %219 = vset.pattern.permute.xlu0 0
    %220 = vperm.xlu0 %219, %v205
    %v221 = vpop.permute.xlu0 %220
    %222 = vset.pattern.permute.xlu0 0
    %223 = vperm.xlu0 %222, %v206
    %v224 = vpop.permute.xlu0 %223
    %225 = vset.pattern.permute.xlu0 0
    %226 = vperm.xlu0 %225, %v207
    %v227 = vpop.permute.xlu0 %226
    %228 = vset.pattern.permute.xlu0 0
    %229 = vperm.xlu0 %228, %v208
    %v230 = vpop.permute.xlu0 %229
    %231 = vset.pattern.permute.xlu0 0
    %232 = vperm.xlu0 %231, %v209
    %v233 = vpop.permute.xlu0 %232
    %vm234 = vcmp.eq.s32.totalorder %v212, 1
    %vm235 = vcmp.eq.s32.totalorder %v215, 1
    %vm236 = vcmp.eq.s32.totalorder %v218, 1
    %vm237 = vcmp.eq.s32.totalorder %v221, 1
    %vm238 = vcmp.eq.s32.totalorder %v224, 1
    %vm239 = vcmp.eq.s32.totalorder %v227, 1
    %vm240 = vcmp.eq.s32.totalorder %v230, 1
    %vm241 = vcmp.eq.s32.totalorder %v233, 1
    %v242 = vsel %vm234, %v46, 0.0
    %v243 = vsel %vm235, %v47, 0.0
    %v244 = vsel %vm236, %v48, 0.0
    %v245 = vsel %vm237, %v49, 0.0
    %v246 = vsel %vm238, %v50, 0.0
    %v247 = vsel %vm239, %v51, 0.0
    %v248 = vsel %vm240, %v52, 0.0
    %v249 = vsel %vm241, %v53, 0.0
    %v250 = vrot.slane %v242, 4
    %v251 = vadd.f32 %v242, %v250
    %v252 = vrot.slane %v251, 2
    %v253 = vadd.f32 %v251, %v252
    %v254 = vrot.slane %v253, 1
    %v255 = vadd.f32 %v253, %v254
    %v256 = vrot.slane %v243, 4
    %v257 = vadd.f32 %v243, %v256
    %v258 = vrot.slane %v257, 2
    %v259 = vadd.f32 %v257, %v258
    %v260 = vrot.slane %v259, 1
    %v261 = vadd.f32 %v259, %v260
    %v262 = vrot.slane %v244, 4
    %v263 = vadd.f32 %v244, %v262
    %v264 = vrot.slane %v263, 2
    %v265 = vadd.f32 %v263, %v264
    %v266 = vrot.slane %v265, 1
    %v267 = vadd.f32 %v265, %v266
    %v268 = vrot.slane %v245, 4
    %v269 = vadd.f32 %v245, %v268
    %v270 = vrot.slane %v269, 2
    %v271 = vadd.f32 %v269, %v270
    %v272 = vrot.slane %v271, 1
    %v273 = vadd.f32 %v271, %v272
    %v274 = vrot.slane %v246, 4
    %v275 = vadd.f32 %v246, %v274
    %v276 = vrot.slane %v275, 2
    %v277 = vadd.f32 %v275, %v276
    %v278 = vrot.slane %v277, 1
    %v279 = vadd.f32 %v277, %v278
    %v280 = vrot.slane %v247, 4
    %v281 = vadd.f32 %v247, %v280
    %v282 = vrot.slane %v281, 2
    %v283 = vadd.f32 %v281, %v282
    %v284 = vrot.slane %v283, 1
    %v285 = vadd.f32 %v283, %v284
    %v286 = vrot.slane %v248, 4
    %v287 = vadd.f32 %v248, %v286
    %v288 = vrot.slane %v287, 2
    %v289 = vadd.f32 %v287, %v288
    %v290 = vrot.slane %v289, 1
    %v291 = vadd.f32 %v289, %v290
    %v292 = vrot.slane %v249, 4
    %v293 = vadd.f32 %v249, %v292
    %v294 = vrot.slane %v293, 2
    %v295 = vadd.f32 %v293, %v294
    %v296 = vrot.slane %v295, 1
    %v297 = vadd.f32 %v295, %v296
    %vm298 = vcmp.gt.s32.totalorder %v54, 1
    %v299 = vsel %vm298, %v54, 1
    %v300 = vcvt.s32.f32 %v299
    %v301 = vrcp.pop %v300
    %v302 = vmul.f32 1.0, %v301
    %304 = vset.pattern.permute.xlu0 0
    %305 = vperm.xlu0 %304, %v302
    %v306 = vpop.permute.xlu0 %305
    %v307 = vrot.slane %v306, 1
    %v308 = vrot.slane %v306, 2
    %v309 = vrot.slane %v306, 3
    %v310 = vrot.slane %v306, 4
    %v311 = vrot.slane %v306, 5
    %v312 = vrot.slane %v306, 6
    %v313 = vrot.slane %v306, 7
    %v322 = vmul.f32 %v111, %v306
    %v323 = vmul.f32 %v117, %v307
    %v324 = vmul.f32 %v123, %v308
    %v325 = vmul.f32 %v129, %v309
    %v326 = vmul.f32 %v135, %v310
    %v327 = vmul.f32 %v141, %v311
    %v328 = vmul.f32 %v147, %v312
    %v329 = vmul.f32 %v153, %v313
    %v330 = vmax.f32 %v46, 0.0
    %v331 = vmax.f32 %v47, 0.0
    %v332 = vmax.f32 %v48, 0.0
    %v333 = vmax.f32 %v49, 0.0
    %v334 = vmax.f32 %v50, 0.0
    %v335 = vmax.f32 %v51, 0.0
    %v336 = vmax.f32 %v52, 0.0
    %v337 = vmax.f32 %v53, 0.0
    %v338 = vld [vmem:[#allocation5] sm:$0xff]
    %v339 = vld [vmem:[#allocation5 + $0x8] sm:$0xff]
    %v340 = vld [vmem:[#allocation5 + $0x10] sm:$0xff]
    %v341 = vld [vmem:[#allocation5 + $0x18] sm:$0xff]
    %v342 = vld [vmem:[#allocation5 + $0x20] sm:$0xff]
    %v343 = vld [vmem:[#allocation5 + $0x28] sm:$0xff]
    %v344 = vld [vmem:[#allocation5 + $0x30] sm:$0xff]
    %v345 = vld [vmem:[#allocation5 + $0x38] sm:$0xff]
    %v346 = vld [vmem:[#allocation5 + $0x40] sm:$0xff]
    %v347 = vld [vmem:[#allocation5 + $0x48] sm:$0xff]
    %v348 = vld [vmem:[#allocation5 + $0x50] sm:$0xff]
    %v349 = vld [vmem:[#allocation5 + $0x58] sm:$0xff]
    %v350 = vld [vmem:[#allocation5 + $0x60] sm:$0xff]
    %v351 = vld [vmem:[#allocation5 + $0x68] sm:$0xff]
    %v352 = vld [vmem:[#allocation5 + $0x70] sm:$0xff]
    %v353 = vld [vmem:[#allocation5 + $0x78] sm:$0xff]
    %v354 = vmax.f32 %v322, 0.0
    %v355 = vmax.f32 %v323, 0.0
    %v356 = vmax.f32 %v324, 0.0
    %v357 = vmax.f32 %v325, 0.0
    %v358 = vmax.f32 %v326, 0.0
    %v359 = vmax.f32 %v327, 0.0
    %v360 = vmax.f32 %v328, 0.0
    %v361 = vmax.f32 %v329, 0.0
    %v362 = vld [vmem:[#allocation5 + $0x80] sm:$0xff]
    %v363 = vld [vmem:[#allocation5 + $0x88] sm:$0xff]
    %v364 = vld [vmem:[#allocation5 + $0x90] sm:$0xff]
    %v365 = vld [vmem:[#allocation5 + $0x98] sm:$0xff]
    %v366 = vld [vmem:[#allocation5 + $0xa0] sm:$0xff]
    %v367 = vld [vmem:[#allocation5 + $0xa8] sm:$0xff]
    %v368 = vld [vmem:[#allocation5 + $0xb0] sm:$0xff]
    %v369 = vld [vmem:[#allocation5 + $0xb8] sm:$0xff]
    %v370 = vld [vmem:[#allocation5 + $0xc0] sm:$0xff]
    %v371 = vld [vmem:[#allocation5 + $0xc8] sm:$0xff]
    %v372 = vld [vmem:[#allocation5 + $0xd0] sm:$0xff]
    %v373 = vld [vmem:[#allocation5 + $0xd8] sm:$0xff]
    %v374 = vld [vmem:[#allocation5 + $0xe0] sm:$0xff]
    %v375 = vld [vmem:[#allocation5 + $0xe8] sm:$0xff]
    %v376 = vld [vmem:[#allocation5 + $0xf0] sm:$0xff]
    %v377 = vld [vmem:[#allocation5 + $0xf8] sm:$0xff]
    %v386 = vrot.slane %v355, 7
    %vm387 = vcmask 1041409
    %v388 = vsel %vm387, %v386, %v354
    %v389 = vrot.slane %v356, 6
    %vm390 = vcmask 1042434
    %v391 = vsel %vm390, %v389, %v388
    %v392 = vrot.slane %v357, 5
    %vm393 = vcmask 1043459
    %v394 = vsel %vm393, %v392, %v391
    %v395 = vrot.slane %v358, 4
    %vm396 = vcmask 1044484
    %v397 = vsel %vm396, %v395, %v394
    %v398 = vrot.slane %v359, 3
    %vm399 = vcmask 1045509
    %v400 = vsel %vm399, %v398, %v397
    %v401 = vrot.slane %v360, 2
    %vm402 = vcmask 1046534
    %v403 = vsel %vm402, %v401, %v400
    %v404 = vrot.slane %v361, 1
    %vm405 = vcmask 1047559
    %v406 = vsel %vm405, %v404, %v403
    %408 = vmatprep.subr.mxu0 0.0
    %409 = vmatpush1.msra.mxu0 %v362
    %410 = vmatprep.subr.mxu0 0.0
    %411 = vmatpush1.msra.mxu0 %v363
    %412 = vmatprep.subr.mxu0 0.0
    %413 = vmatpush1.msra.mxu0 %v364
    %414 = vmatprep.subr.mxu0 0.0
    %415 = vmatpush1.msra.mxu0 %v365
    %416 = vmatprep.subr.mxu0 0.0
    %417 = vmatpush1.msra.mxu0 %v366
    %418 = vmatprep.subr.mxu0 0.0
    %419 = vmatpush1.msra.mxu0 %v367
    %420 = vmatprep.subr.mxu0 0.0
    %421 = vmatpush1.msra.mxu0 %v368
    %422 = vmatprep.subr.mxu0 0.0
    %423 = vmatpush1.msra.mxu0 %v369
    %424 = vmatprep.subr.mxu0 0.0
    %425 = vmatpush1.msra.mxu0 %v370
    %426 = vmatprep.subr.mxu0 0.0
    %427 = vmatpush1.msra.mxu0 %v371
    %428 = vmatprep.subr.mxu0 0.0
    %429 = vmatpush1.msra.mxu0 %v372
    %430 = vmatprep.subr.mxu0 0.0
    %431 = vmatpush1.msra.mxu0 %v373
    %432 = vmatprep.subr.mxu0 0.0
    %433 = vmatpush1.msra.mxu0 %v374
    %434 = vmatprep.subr.mxu0 0.0
    %435 = vmatpush1.msra.mxu0 %v375
    %436 = vmatprep.subr.mxu0 0.0
    %437 = vmatpush1.msra.mxu0 %v376
    %438 = vmatprep.subr.mxu0 0.0
    %439 = vmatpush1.msra.mxu0 %v377
    %440 = vmatprep.subr.mxu0 0.0
    %441 = vmatpush1.msra.mxu0 0.0
    %442 = vmatprep.subr.mxu0 0.0
    %443 = vmatpush1.msra.mxu0 0.0
    %444 = vmatprep.subr.mxu0 0.0
    %445 = vmatpush1.msra.mxu0 0.0
    %446 = vmatprep.subr.mxu0 0.0
    %447 = vmatpush1.msra.mxu0 0.0
    %448 = vmatprep.subr.mxu0 0.0
    %449 = vmatpush1.msra.mxu0 0.0
    %450 = vmatprep.subr.mxu0 0.0
    %451 = vmatpush1.msra.mxu0 0.0
    %452 = vmatprep.subr.mxu0 0.0
    %453 = vmatpush1.msra.mxu0 0.0
    %454 = vmatprep.subr.mxu0 0.0
    %455 = vmatpush1.msra.mxu0 0.0
    %456 = vmatprep.subr.mxu0 0.0
    %457 = vmatpush1.msra.mxu0 0.0
    %458 = vmatprep.subr.mxu0 0.0
    %459 = vmatpush1.msra.mxu0 0.0
    %460 = vmatprep.subr.mxu0 0.0
    %461 = vmatpush1.msra.mxu0 0.0
    %462 = vmatprep.subr.mxu0 0.0
    %463 = vmatpush1.msra.mxu0 0.0
    %464 = vmatprep.subr.mxu0 0.0
    %465 = vmatpush1.msra.mxu0 0.0
    %466 = vmatprep.subr.mxu0 0.0
    %467 = vmatpush1.msra.mxu0 0.0
    %468 = vmatprep.subr.mxu0 0.0
    %469 = vmatpush1.msra.mxu0 0.0
    %470 = vmatprep.subr.mxu0 0.0
    %471 = vmatpush1.msra.mxu0 0.0
    %472 = vmatprep.mubr.f32.mxu0 0.0
    %473 = vmatmul.mubr.f32.gmra.mrb[0].mxu0 %v406
    %v474 = vpop.f32.mrb[0].mxu0
    %v475 = vadd.f32 0.0, %v474
    %v476 = vpop.f32.mrb[0].mxu0
    %477 = vdwg.mxu0
    %v486 = vrot.slane %v331, 7
    %v487 = vsel %vm387, %v486, %v330
    %v488 = vrot.slane %v332, 6
    %v489 = vsel %vm390, %v488, %v487
    %v490 = vrot.slane %v333, 5
    %v491 = vsel %vm393, %v490, %v489
    %v492 = vrot.slane %v334, 4
    %v493 = vsel %vm396, %v492, %v491
    %v494 = vrot.slane %v335, 3
    %v495 = vsel %vm399, %v494, %v493
    %v496 = vrot.slane %v336, 2
    %v497 = vsel %vm402, %v496, %v495
    %v498 = vrot.slane %v337, 1
    %v499 = vsel %vm405, %v498, %v497
    %501 = vmatprep.subr.mxu0 0.0
    %502 = vmatpush1.msra.mxu0 %v338
    %503 = vmatprep.subr.mxu0 0.0
    %504 = vmatpush1.msra.mxu0 %v339
    %505 = vmatprep.subr.mxu0 0.0
    %506 = vmatpush1.msra.mxu0 %v340
    %507 = vmatprep.subr.mxu0 0.0
    %508 = vmatpush1.msra.mxu0 %v341
    %509 = vmatprep.subr.mxu0 0.0
    %510 = vmatpush1.msra.mxu0 %v342
    %511 = vmatprep.subr.mxu0 0.0
    %512 = vmatpush1.msra.mxu0 %v343
    %513 = vmatprep.subr.mxu0 0.0
    %514 = vmatpush1.msra.mxu0 %v344
    %515 = vmatprep.subr.mxu0 0.0
    %516 = vmatpush1.msra.mxu0 %v345
    %517 = vmatprep.subr.mxu0 0.0
    %518 = vmatpush1.msra.mxu0 %v346
    %519 = vmatprep.subr.mxu0 0.0
    %520 = vmatpush1.msra.mxu0 %v347
    %521 = vmatprep.subr.mxu0 0.0
    %522 = vmatpush1.msra.mxu0 %v348
    %523 = vmatprep.subr.mxu0 0.0
    %524 = vmatpush1.msra.mxu0 %v349
    %525 = vmatprep.subr.mxu0 0.0
    %526 = vmatpush1.msra.mxu0 %v350
    %527 = vmatprep.subr.mxu0 0.0
    %528 = vmatpush1.msra.mxu0 %v351
    %529 = vmatprep.subr.mxu0 0.0
    %530 = vmatpush1.msra.mxu0 %v352
    %531 = vmatprep.subr.mxu0 0.0
    %532 = vmatpush1.msra.mxu0 %v353
    %533 = vmatprep.subr.mxu0 0.0
    %534 = vmatpush1.msra.mxu0 0.0
    %535 = vmatprep.subr.mxu0 0.0
    %536 = vmatpush1.msra.mxu0 0.0
    %537 = vmatprep.subr.mxu0 0.0
    %538 = vmatpush1.msra.mxu0 0.0
    %539 = vmatprep.subr.mxu0 0.0
    %540 = vmatpush1.msra.mxu0 0.0
    %541 = vmatprep.subr.mxu0 0.0
    %542 = vmatpush1.msra.mxu0 0.0
    %543 = vmatprep.subr.mxu0 0.0
    %544 = vmatpush1.msra.mxu0 0.0
    %545 = vmatprep.subr.mxu0 0.0
    %546 = vmatpush1.msra.mxu0 0.0
    %547 = vmatprep.subr.mxu0 0.0
    %548 = vmatpush1.msra.mxu0 0.0
    %549 = vmatprep.subr.mxu0 0.0
    %550 = vmatpush1.msra.mxu0 0.0
    %551 = vmatprep.subr.mxu0 0.0
    %552 = vmatpush1.msra.mxu0 0.0
    %553 = vmatprep.subr.mxu0 0.0
    %554 = vmatpush1.msra.mxu0 0.0
    %555 = vmatprep.subr.mxu0 0.0
    %556 = vmatpush1.msra.mxu0 0.0
    %557 = vmatprep.subr.mxu0 0.0
    %558 = vmatpush1.msra.mxu0 0.0
    %559 = vmatprep.subr.mxu0 0.0
    %560 = vmatpush1.msra.mxu0 0.0
    %561 = vmatprep.subr.mxu0 0.0
    %562 = vmatpush1.msra.mxu0 0.0
    %563 = vmatprep.subr.mxu0 0.0
    %564 = vmatpush1.msra.mxu0 0.0
    %565 = vmatprep.mubr.f32.mxu0 0.0
    %566 = vmatmul.mubr.f32.gmra.mrb[0].mxu0 %v499
    %v567 = vpop.f32.mrb[0].mxu0
    %v568 = vadd.f32 %v475, %v567
    %v569 = vpop.f32.mrb[0].mxu0
    %570 = vdwg.mxu0
    %v571 = vmax.f32 %v255, 0.0
    %v572 = vmax.f32 %v261, 0.0
    %v573 = vmax.f32 %v267, 0.0
    %v574 = vmax.f32 %v273, 0.0
    %v575 = vmax.f32 %v279, 0.0
    %v576 = vmax.f32 %v285, 0.0
    %v577 = vmax.f32 %v291, 0.0
    %v578 = vmax.f32 %v297, 0.0
    %v579 = vld [vmem:[#allocation5 + $0x100] sm:$0xff]
    %v580 = vld [vmem:[#allocation5 + $0x108] sm:$0xff]
    %v581 = vld [vmem:[#allocation5 + $0x110] sm:$0xff]
    %v582 = vld [vmem:[#allocation5 + $0x118] sm:$0xff]
    %v583 = vld [vmem:[#allocation5 + $0x120] sm:$0xff]
    %v584 = vld [vmem:[#allocation5 + $0x128] sm:$0xff]
    %v585 = vld [vmem:[#allocation5 + $0x130] sm:$0xff]
    %v586 = vld [vmem:[#allocation5 + $0x138] sm:$0xff]
    %v587 = vld [vmem:[#allocation5 + $0x140] sm:$0xff]
    %v588 = vld [vmem:[#allocation5 + $0x148] sm:$0xff]
    %v589 = vld [vmem:[#allocation5 + $0x150] sm:$0xff]
    %v590 = vld [vmem:[#allocation5 + $0x158] sm:$0xff]
    %v591 = vld [vmem:[#allocation5 + $0x160] sm:$0xff]
    %v592 = vld [vmem:[#allocation5 + $0x168] sm:$0xff]
    %v593 = vld [vmem:[#allocation5 + $0x170] sm:$0xff]
    %v594 = vld [vmem:[#allocation5 + $0x178] sm:$0xff]
    %v603 = vsel %vm387, %v572, %v571
    %v604 = vsel %vm390, %v573, %v603
    %v605 = vsel %vm393, %v574, %v604
    %v606 = vsel %vm396, %v575, %v605
    %v607 = vsel %vm399, %v576, %v606
    %v608 = vsel %vm402, %v577, %v607
    %v609 = vsel %vm405, %v578, %v608
    %611 = vmatprep.subr.mxu0 0.0
    %612 = vmatpush1.msra.mxu0 %v579
    %613 = vmatprep.subr.mxu0 0.0
    %614 = vmatpush1.msra.mxu0 %v580
    %615 = vmatprep.subr.mxu0 0.0
    %616 = vmatpush1.msra.mxu0 %v581
    %617 = vmatprep.subr.mxu0 0.0
    %618 = vmatpush1.msra.mxu0 %v582
    %619 = vmatprep.subr.mxu0 0.0
    %620 = vmatpush1.msra.mxu0 %v583
    %621 = vmatprep.subr.mxu0 0.0
    %622 = vmatpush1.msra.mxu0 %v584
    %623 = vmatprep.subr.mxu0 0.0
    %624 = vmatpush1.msra.mxu0 %v585
    %625 = vmatprep.subr.mxu0 0.0
    %626 = vmatpush1.msra.mxu0 %v586
    %627 = vmatprep.subr.mxu0 0.0
    %628 = vmatpush1.msra.mxu0 %v587
    %629 = vmatprep.subr.mxu0 0.0
    %630 = vmatpush1.msra.mxu0 %v588
    %631 = vmatprep.subr.mxu0 0.0
    %632 = vmatpush1.msra.mxu0 %v589
    %633 = vmatprep.subr.mxu0 0.0
    %634 = vmatpush1.msra.mxu0 %v590
    %635 = vmatprep.subr.mxu0 0.0
    %636 = vmatpush1.msra.mxu0 %v591
    %637 = vmatprep.subr.mxu0 0.0
    %638 = vmatpush1.msra.mxu0 %v592
    %639 = vmatprep.subr.mxu0 0.0
    %640 = vmatpush1.msra.mxu0 %v593
    %641 = vmatprep.subr.mxu0 0.0
    %642 = vmatpush1.msra.mxu0 %v594
    %643 = vmatprep.subr.mxu0 0.0
    %644 = vmatpush1.msra.mxu0 0.0
    %645 = vmatprep.subr.mxu0 0.0
    %646 = vmatpush1.msra.mxu0 0.0
    %647 = vmatprep.subr.mxu0 0.0
    %648 = vmatpush1.msra.mxu0 0.0
    %649 = vmatprep.subr.mxu0 0.0
    %650 = vmatpush1.msra.mxu0 0.0
    %651 = vmatprep.subr.mxu0 0.0
    %652 = vmatpush1.msra.mxu0 0.0
    %653 = vmatprep.subr.mxu0 0.0
    %654 = vmatpush1.msra.mxu0 0.0
    %655 = vmatprep.subr.mxu0 0.0
    %656 = vmatpush1.msra.mxu0 0.0
    %657 = vmatprep.subr.mxu0 0.0
    %658 = vmatpush1.msra.mxu0 0.0
    %659 = vmatprep.subr.mxu0 0.0
    %660 = vmatpush1.msra.mxu0 0.0
    %661 = vmatprep.subr.mxu0 0.0
    %662 = vmatpush1.msra.mxu0 0.0
    %663 = vmatprep.subr.mxu0 0.0
    %664 = vmatpush1.msra.mxu0 0.0
    %665 = vmatprep.subr.mxu0 0.0
    %666 = vmatpush1.msra.mxu0 0.0
    %667 = vmatprep.subr.mxu0 0.0
    %668 = vmatpush1.msra.mxu0 0.0
    %669 = vmatprep.subr.mxu0 0.0
    %670 = vmatpush1.msra.mxu0 0.0
    %671 = vmatprep.subr.mxu0 0.0
    %672 = vmatpush1.msra.mxu0 0.0
    %673 = vmatprep.subr.mxu0 0.0
    %674 = vmatpush1.msra.mxu0 0.0
    %675 = vmatprep.mubr.f32.mxu0 0.0
    %676 = vmatmul.mubr.f32.gmra.mrb[0].mxu0 %v609
    %v677 = vpop.f32.mrb[0].mxu0
    %v678 = vadd.f32 0.0, %v677
    %v679 = vpop.f32.mrb[0].mxu0
    %680 = vdwg.mxu0
    %v681 = vadd.f32 %v568, %v678
    %v682 = vld [vmem:[%s3] sm:$0x1]
    %v684 = vlaneseq
    %v685 = vshrl.u32 %v684, 7
    %v686 = vsub.s32 0, %v685
    %v687 = vrot.slane %v682, %v686
    %v689 = vadd.f32 %v681, %v687
    %690 = vst [vmem:[#allocation7] sm:$0xff] %v689
    // Predicated region
    $region26: #{tpu_custom_call.1} parent=1 // pred_check
      _
    $region27: #{tpu_custom_call.1} parent=1 // pred_check_branch
      %692 = sbr.rel (0) target = $region29
    $region28: #{tpu_custom_call.1} parent=1 // pred_region
      %s694 = ssub.s32 128, 128
      %695 = vsyncadd [#allocation4], %s694
      %s697 = sshll.u32 [#allocation7], 4
      %s698 = int_to_ptr.vmem [resolvable:$true] %s697
      %700 = dma.vmem_to_hbm [thread:$0]  %s698, 128, %s4, [#allocation4]
    $region29: #{tpu_custom_call.1} parent=1 // pred_fallthru
      _
    // Predicated region
    $region30: #{tpu_custom_call.1} parent=1 // pred_check
      _
    $region31: #{tpu_custom_call.1} parent=1 // pred_check_branch
      %702 = sbr.rel (0) target = $region33
    $region32: #{tpu_custom_call.1} parent=1 // pred_region
      %703 = dma.done [#allocation4], 128
    $region33: #{tpu_custom_call.1} parent=1 // pred_fallthru
      _
    %704 = vsyncpa [#allocation3], 1
    %705 = vsyncpa [#allocation6], 1
    %706 = vsyncpa [#allocation4], 1

</llo_original>
